<compile_context>
chip_gen: v7x
topology: tpu7x:2x2x1
jax: 0.10.0
libtpu: 0.0.40
codegen_flags: <defaults>
</compile_context>

<pallas_src>
import functools

import jax
import jax.numpy as jnp
from jax import lax
from jax.experimental import pallas as pl
from jax.experimental.pallas import tpu as pltpu


def _fused_infonce_kernel(h1_ref, h2_ref, out_ref, bnorm_ref, colsum_ref, acc_ref,
                          *, tau, n_valid, tm, n_pad):
    i = pl.program_id(0)

    def l2_normalize(x):
        # matches torch F.normalize(x, dim=-1, eps=1e-12): clamp on the norm
        ssq = jnp.sum(x * x, axis=-1, keepdims=True)
        return x * lax.rsqrt(jnp.maximum(ssq, jnp.float32(1e-24)))

    @pl.when(i == 0)
    def _init():
        colsum_ref[...] = jnp.zeros_like(colsum_ref)
        acc_ref[...] = jnp.zeros_like(acc_ref)
        # Normalize the resident key set ONCE; reused by all grid steps below.
        bnorm_ref[...] = l2_normalize(h2_ref[...].astype(jnp.float32))

    inv_tau = jnp.float32(1.0 / tau)

    a = l2_normalize(h1_ref[...].astype(jnp.float32)) * inv_tau      # (TM, D), tau folded in
    b = bnorm_ref[...]                                               # (N_pad, D), normalized keys

    # Diagonal entries sim_ii for this row block: row-wise dot with the matching key rows.
    row0 = pl.multiple_of(i * tm, 8)
    b_rows = bnorm_ref[pl.ds(row0, tm), :]                           # (TM, D)
    diag = jnp.sum(a * b_rows, axis=-1, keepdims=True)               # (TM, 1) == sim_ii (scaled)

    # sim[r, c] = <a_r, b_c> / tau  (tau already folded into a).  |sim| <= 1/tau, exp is safe.
    sim = lax.dot_general(a, b, dimension_numbers=(((1,), (1,)), ((), ())),
                          preferred_element_type=jnp.float32)        # (TM, N_pad)
    e = jnp.exp(sim)

    if n_pad != n_valid:  # static: masking code only emitted when rows/cols were zero-padded
        row_ids = row0 + lax.broadcasted_iota(jnp.int32, (tm, 1), 0)
        col_ids = lax.broadcasted_iota(jnp.int32, (1, n_pad), 1)
        valid_row = (row_ids < n_valid).astype(jnp.float32)          # (TM, 1)
        valid_col = (col_ids < n_valid).astype(jnp.float32)          # (1, N_pad)
        e = e * (valid_row * valid_col)
        rowsum = jnp.sum(e, axis=1, keepdims=True)                   # (TM, 1)
        rowsum = jnp.where(valid_row > 0, rowsum, 1.0)               # avoid log(0) on pad rows
        diag = diag * valid_row
    else:
        rowsum = jnp.sum(e, axis=1, keepdims=True)

    # Branch-2 column sums accumulate across the whole grid (XLU sublane reduce).
    colsum_ref[...] += jnp.sum(e, axis=0, keepdims=True)             # (1, N_pad)
    # Branch-1 per-row terms + the shared diagonal (appears once per branch).
    acc_ref[...] += jnp.sum(2.0 * diag - jnp.log(rowsum))

    @pl.when(i == pl.num_programs(0) - 1)
    def _finalize():
        colsum = colsum_ref[...]
        if n_pad != n_valid:
            col_ids = lax.broadcasted_iota(jnp.int32, (1, n_pad), 1)
            colsum = jnp.where(col_ids < n_valid, colsum, 1.0)       # log(1) = 0 for pad cols
        total = acc_ref[...] - jnp.sum(jnp.log(colsum))              # (1, 1)
        out_ref[...] = (-(0.5 / n_valid)) * total


def _round_up(x, m):
    return ((x + m - 1) // m) * m


def _choose_row_tile(n):
    """Pick the largest power-of-two row tile (<=512) whose (tm, N) f32 sim tile
    stays within a ~6 MiB VMEM budget; fall back to 8."""
    n8 = _round_up(max(n, 8), 8)
    budget = 6 * 1024 * 1024
    tm = 8
    for cand in (512, 256, 128, 64, 32, 16, 8):
        if cand <= n8 and cand * n8 * 4 <= budget:
            tm = cand
            break
    n_pad = _round_up(n, tm)
    return tm, n_pad


def dual_branch_contrast_l2l(h1, h2, extra_pos_mask=None, extra_neg_mask=None, tau=0.2):
    """DualBranchContrast(loss=InfoNCE(tau), mode='L2L', intraview_negs=False)."""
    if extra_pos_mask is not None or extra_neg_mask is not None:
        # TODO(synk): extra_pos_mask / extra_neg_mask need the general (possibly asymmetric)
        # masked InfoNCE path (combined weight mask + pos row counts); only the default
        # eye-mask L2L path is implemented in the fused kernel.
        raise NotImplementedError("extra masks not supported by the fused L2L kernel")

    n, d = h1.shape
    assert h2.shape == (n, d)

    tm, n_pad = _choose_row_tile(n)
    if n_pad != n:
        h1 = jnp.pad(h1, ((0, n_pad - n), (0, 0)))
        h2 = jnp.pad(h2, ((0, n_pad - n), (0, 0)))

    grid = n_pad // tm

    # Rough per-step VMEM footprint: double-buffered anchor rows, resident keys (raw +
    # normalized scratch), sim/exp tile (x2 intermediates), colsum scratch.  Doubled for
    # headroom, capped below v7x's 64 MiB physical VMEM.
    vmem_est = 4 * (2 * tm * d + 3 * n_pad * d + 2 * tm * n_pad + n_pad + 256)
    vmem_limit = int(min(max(2 * vmem_est, 16 * 1024 * 1024), 48 * 1024 * 1024))

    kernel = functools.partial(_fused_infonce_kernel, tau=tau, n_valid=n,
                               tm=tm, n_pad=n_pad)

    out = pl.pallas_call(
        kernel,
        out_shape=jax.ShapeDtypeStruct((1, 1), jnp.float32),
        grid_spec=pltpu.PrefetchScalarGridSpec(
            num_scalar_prefetch=0,
            grid=(grid,),
            in_specs=[
                pl.BlockSpec((tm, d), lambda i: (i, 0)),        # anchor rows, streamed
                pl.BlockSpec((n_pad, d), lambda i: (0, 0)),     # full key set, resident
            ],
            out_specs=pl.BlockSpec((1, 1), lambda i: (0, 0)),
            scratch_shapes=[
                pltpu.VMEM((n_pad, d), jnp.float32),            # normalized keys (computed once)
                pltpu.VMEM((1, n_pad), jnp.float32),            # column sums of exp(sim)
                pltpu.VMEM((1, 1), jnp.float32),                # sum_i(2*sim_ii - log rowsum_i)
            ],
        ),
        compiler_params=pltpu.CompilerParams(
            # colsum/acc/output accumulate across row blocks -> reduction axis
            dimension_semantics=("arbitrary",),
            vmem_limit_bytes=vmem_limit,
        ),
    )(h1, h2)
    return out[0, 0]


def _reference(h1, h2, tau=0.2):
    # pure-JAX reference following the original (unfused, mask-based) torch math
    def norm(x):
        return x / jnp.maximum(jnp.linalg.norm(x, axis=-1, keepdims=True), 1e-12)

    n = h1.shape[0]
    pos = jnp.eye(n, dtype=jnp.float32)
    neg = 1.0 - pos

    def infonce(a, b):
        sim = norm(a) @ norm(b).T / tau
        exp_sim = jnp.exp(sim) * (pos + neg)
        log_prob = sim - jnp.log(exp_sim.sum(axis=1, keepdims=True))
        loss = (log_prob * pos).sum(axis=1) / pos.sum(axis=1)
        return -loss.mean()

    return 0.5 * (infonce(h1, h2) + infonce(h2, h1))


if __name__ == "__main__":
    key = jax.random.PRNGKey(0)
    k1, k2 = jax.random.split(key)
    N, D = 8, 32  # small: 8 nodes, hidden dim 32
    h1 = jax.random.normal(k1, (N, D), dtype=jnp.float32)
    h2 = jax.random.normal(k2, (N, D), dtype=jnp.float32)

    loss = dual_branch_contrast_l2l(h1, h2)
    loss = jax.block_until_ready(loss)
    ref = _reference(h1, h2)
    assert jnp.allclose(loss, ref, rtol=1e-4, atol=1e-4), (loss, ref)

    # also exercise the multi-step grid + row-padding/masking path
    N2, D2 = 300, 64
    g1 = jax.random.normal(jax.random.PRNGKey(1), (N2, D2), dtype=jnp.float32)
    g2 = jax.random.normal(jax.random.PRNGKey(2), (N2, D2), dtype=jnp.float32)
    loss2 = jax.block_until_ready(dual_branch_contrast_l2l(g1, g2))
    ref2 = _reference(g1, g2)
    assert jnp.allclose(loss2, ref2, rtol=1e-4, atol=1e-4), (loss2, ref2)

    print("KERNEL_OK")
</pallas_src>

<mosaic_0001>
module attributes {stable_mosaic.version = 11 : i64} {
  func.func @_fused_infonce_kernel(%arg0: i32, %arg1: memref<8x32xf32, #tpu.memory_space<vmem>>, %arg2: memref<8x32xf32, #tpu.memory_space<vmem>>, %arg3: memref<1x1xf32, #tpu.memory_space<vmem>>, %arg4: memref<8x32xf32, #tpu.memory_space<vmem>>, %arg5: memref<1x8xf32, #tpu.memory_space<vmem>>, %arg6: memref<1x1xf32, #tpu.memory_space<vmem>>) attributes {dimension_semantics = [#tpu.dimension_semantics<arbitrary>], iteration_bounds = array<i64: 1>, scalar_prefetch = 0 : i64, scratch_operands = 3 : i64, tpu.core_type = #tpu.core_type<tc>, window_params = [{transform_indices = @transform_0, window_bounds = array<i64: 8, 32>}, {pipeline_mode = #tpu.pipeline_mode<synchronous>, transform_indices = @transform_1, window_bounds = array<i64: 8, 32>}, {pipeline_mode = #tpu.pipeline_mode<synchronous>, transform_indices = @transform_2, window_bounds = array<i64: 1, 1>}]} {
    %c0_i32 = arith.constant 0 : i32
    %0 = arith.cmpi eq, %arg0, %c0_i32 : i32
    %1 = arith.extui %0 : i1 to i32
    %c0_i32_0 = arith.constant 0 : i32
    %2 = arith.cmpi ne, %1, %c0_i32_0 : i32
    scf.if %2 {
      %cst_23 = arith.constant 0.000000e+00 : f32
      %46 = vector.broadcast %cst_23 : f32 to vector<1x8xf32>
      %c0_24 = arith.constant 0 : index
      %c0_25 = arith.constant 0 : index
      %47 = vector.load %arg5[%c0_24, %c0_25] : memref<1x8xf32, #tpu.memory_space<vmem>>, vector<1x8xf32>
      tpu.vector_store %arg5[%c0_24, %c0_25], %46 {strides = array<i32>} : memref<1x8xf32, #tpu.memory_space<vmem>>, vector<1x8xf32>,
      %cst_26 = arith.constant 0.000000e+00 : f32
      %48 = vector.broadcast %cst_26 : f32 to vector<1x1xf32>
      %c0_27 = arith.constant 0 : index
      %c0_28 = arith.constant 0 : index
      %49 = vector.load %arg6[%c0_27, %c0_28] : memref<1x1xf32, #tpu.memory_space<vmem>>, vector<1x1xf32>
      tpu.vector_store %arg6[%c0_27, %c0_28], %48 {strides = array<i32>} : memref<1x1xf32, #tpu.memory_space<vmem>>, vector<1x1xf32>,
      %c0_29 = arith.constant 0 : index
      %c0_30 = arith.constant 0 : index
      %50 = vector.load %arg2[%c0_29, %c0_30] : memref<8x32xf32, #tpu.memory_space<vmem>>, vector<8x32xf32>
      %51 = arith.mulf %50, %50 : vector<8x32xf32>
      %cst_31 = arith.constant dense<0.000000e+00> : vector<8xf32>
      %52 = vector.multi_reduction <add>, %51, %cst_31 [1] : vector<8x32xf32> to vector<8xf32>
      %53 = vector.shape_cast %52 : vector<8xf32> to vector<8x1xf32>
      %cst_32 = arith.constant 1.000000e-24 : f32
      %54 = vector.broadcast %cst_32 : f32 to vector<8x1xf32>
      %55 = arith.maximumf %53, %54 : vector<8x1xf32>
      %56 = math.rsqrt %55 : vector<8x1xf32>
      %57 = vector.broadcast %56 : vector<8x1xf32> to vector<8x32xf32>
      %58 = arith.mulf %50, %57 : vector<8x32xf32>
      %c0_33 = arith.constant 0 : index
      %c0_34 = arith.constant 0 : index
      %59 = vector.load %arg4[%c0_33, %c0_34] : memref<8x32xf32, #tpu.memory_space<vmem>>, vector<8x32xf32>
      tpu.vector_store %arg4[%c0_33, %c0_34], %58 {strides = array<i32>} : memref<8x32xf32, #tpu.memory_space<vmem>>, vector<8x32xf32>,
    } else {
    }
    %c0 = arith.constant 0 : index
    %c0_1 = arith.constant 0 : index
    %3 = vector.load %arg1[%c0, %c0_1] : memref<8x32xf32, #tpu.memory_space<vmem>>, vector<8x32xf32>
    %4 = arith.mulf %3, %3 : vector<8x32xf32>
    %cst = arith.constant dense<0.000000e+00> : vector<8xf32>
    %5 = vector.multi_reduction <add>, %4, %cst [1] : vector<8x32xf32> to vector<8xf32>
    %6 = vector.shape_cast %5 : vector<8xf32> to vector<8x1xf32>
    %cst_2 = arith.constant 1.000000e-24 : f32
    %7 = vector.broadcast %cst_2 : f32 to vector<8x1xf32>
    %8 = arith.maximumf %6, %7 : vector<8x1xf32>
    %9 = math.rsqrt %8 : vector<8x1xf32>
    %10 = vector.broadcast %9 : vector<8x1xf32> to vector<8x32xf32>
    %11 = arith.mulf %3, %10 : vector<8x32xf32>
    %cst_3 = arith.constant 5.000000e+00 : f32
    %12 = vector.broadcast %cst_3 : f32 to vector<8x32xf32>
    %13 = arith.mulf %11, %12 : vector<8x32xf32>
    %c0_4 = arith.constant 0 : index
    %c0_5 = arith.constant 0 : index
    %14 = vector.load %arg4[%c0_4, %c0_5] : memref<8x32xf32, #tpu.memory_space<vmem>>, vector<8x32xf32>
    %c8_i32 = arith.constant 8 : i32
    %15 = arith.muli %arg0, %c8_i32 : i32
    %16 = tpu.assume_multiple %15, 8 : i32
    %17 = arith.index_cast %16 : i32 to index
    %c0_6 = arith.constant 0 : index
    %18 = vector.load %arg4[%17, %c0_6] : memref<8x32xf32, #tpu.memory_space<vmem>>, vector<8x32xf32>
    %19 = arith.mulf %13, %18 : vector<8x32xf32>
    %cst_7 = arith.constant dense<0.000000e+00> : vector<8xf32>
    %20 = vector.multi_reduction <add>, %19, %cst_7 [1] : vector<8x32xf32> to vector<8xf32>
    %21 = vector.shape_cast %20 : vector<8xf32> to vector<8x1xf32>
    %cst_8 = arith.constant dense<0.000000e+00> : vector<8x8xf32>
    %22 = tpu.matmul %13, %14, %cst_8 {dimension_numbers = #tpu.dot_dimension_numbers<[1], [1], [0], [0], [0, 0, 1, 0], [], []>} : vector<8x32xf32>, vector<8x32xf32>, vector<8x8xf32> -> vector<8x8xf32>
    %23 = math.exp %22 : vector<8x8xf32>
    %cst_9 = arith.constant dense<0.000000e+00> : vector<8xf32>
    %24 = vector.multi_reduction <add>, %23, %cst_9 [1] : vector<8x8xf32> to vector<8xf32>
    %25 = vector.shape_cast %24 : vector<8xf32> to vector<8x1xf32>
    %c0_10 = arith.constant 0 : index
    %c0_11 = arith.constant 0 : index
    %26 = vector.load %arg5[%c0_10, %c0_11] : memref<1x8xf32, #tpu.memory_space<vmem>>, vector<1x8xf32>
    %cst_12 = arith.constant dense<0.000000e+00> : vector<8xf32>
    %27 = vector.multi_reduction <add>, %23, %cst_12 [0] : vector<8x8xf32> to vector<8xf32>
    %28 = vector.shape_cast %27 : vector<8xf32> to vector<1x8xf32>
    %29 = arith.addf %26, %28 : vector<1x8xf32>
    %c0_13 = arith.constant 0 : index
    %c0_14 = arith.constant 0 : index
    %30 = vector.load %arg5[%c0_13, %c0_14] : memref<1x8xf32, #tpu.memory_space<vmem>>, vector<1x8xf32>
    tpu.vector_store %arg5[%c0_13, %c0_14], %29 {strides = array<i32>} : memref<1x8xf32, #tpu.memory_space<vmem>>, vector<1x8xf32>,
    %c0_15 = arith.constant 0 : index
    %c0_16 = arith.constant 0 : index
    %31 = vector.load %arg6[%c0_15, %c0_16] : memref<1x1xf32, #tpu.memory_space<vmem>>, vector<1x1xf32>
    %cst_17 = arith.constant 2.000000e+00 : f32
    %32 = vector.broadcast %cst_17 : f32 to vector<8x1xf32>
    %33 = arith.mulf %32, %21 : vector<8x1xf32>
    %34 = math.log %25 : vector<8x1xf32>
    %35 = arith.subf %33, %34 : vector<8x1xf32>
    %36 = vector.shape_cast %35 : vector<8x1xf32> to vector<1x8x1xf32>
    %cst_18 = arith.constant dense<0.000000e+00> : vector<1xf32>
    %37 = vector.multi_reduction <add>, %36, %cst_18 [1, 2] : vector<1x8x1xf32> to vector<1xf32>
    %38 = vector.shape_cast %37 : vector<1xf32> to vector<1x1x1xf32>
    %39 = vector.extract %38[0, 0, 0] : f32 from vector<1x1x1xf32>
    %40 = vector.broadcast %39 : f32 to vector<1x1xf32>
    %41 = arith.addf %31, %40 : vector<1x1xf32>
    %c0_19 = arith.constant 0 : index
    %c0_20 = arith.constant 0 : index
    %42 = vector.load %arg6[%c0_19, %c0_20] : memref<1x1xf32, #tpu.memory_space<vmem>>, vector<1x1xf32>
    tpu.vector_store %arg6[%c0_19, %c0_20], %41 {strides = array<i32>} : memref<1x1xf32, #tpu.memory_space<vmem>>, vector<1x1xf32>,
    %c0_i32_21 = arith.constant 0 : i32
    %43 = arith.cmpi eq, %arg0, %c0_i32_21 : i32
    %44 = arith.extui %43 : i1 to i32
    %c0_i32_22 = arith.constant 0 : i32
    %45 = arith.cmpi ne, %44, %c0_i32_22 : i32
    scf.if %45 {
      %c0_23 = arith.constant 0 : index
      %c0_24 = arith.constant 0 : index
      %46 = vector.load %arg5[%c0_23, %c0_24] : memref<1x8xf32, #tpu.memory_space<vmem>>, vector<1x8xf32>
      %c0_25 = arith.constant 0 : index
      %c0_26 = arith.constant 0 : index
      %47 = vector.load %arg6[%c0_25, %c0_26] : memref<1x1xf32, #tpu.memory_space<vmem>>, vector<1x1xf32>
      %48 = math.log %46 : vector<1x8xf32>
      %49 = vector.shape_cast %48 : vector<1x8xf32> to vector<1x1x8xf32>
      %cst_27 = arith.constant dense<0.000000e+00> : vector<1xf32>
      %50 = vector.multi_reduction <add>, %49, %cst_27 [1, 2] : vector<1x1x8xf32> to vector<1xf32>
      %51 = vector.shape_cast %50 : vector<1xf32> to vector<1x1x1xf32>
      %52 = vector.extract %51[0, 0, 0] : f32 from vector<1x1x1xf32>
      %53 = vector.broadcast %52 : f32 to vector<1x1xf32>
      %54 = arith.subf %47, %53 : vector<1x1xf32>
      %cst_28 = arith.constant -6.250000e-02 : f32
      %55 = vector.broadcast %cst_28 : f32 to vector<1x1xf32>
      %56 = arith.mulf %55, %54 : vector<1x1xf32>
      %c0_29 = arith.constant 0 : index
      %c0_30 = arith.constant 0 : index
      %57 = vector.load %arg3[%c0_29, %c0_30] : memref<1x1xf32, #tpu.memory_space<vmem>>, vector<1x1xf32>
      tpu.vector_store %arg3[%c0_29, %c0_30], %56 {strides = array<i32>} : memref<1x1xf32, #tpu.memory_space<vmem>>, vector<1x1xf32>,
    } else {
    }
    return
  }
  func.func @transform_0(%arg0: i32) -> (i32, i32) {
    %c0_i32 = arith.constant 0 : i32
    %c0_i32_0 = arith.constant 0 : i32
    return %arg0, %c0_i32 : i32, i32
  }
  func.func @transform_1(%arg0: i32) -> (i32, i32) {
    %c0_i32 = arith.constant 0 : i32
    %c0_i32_0 = arith.constant 0 : i32
    %c0_i32_1 = arith.constant 0 : i32
    return %c0_i32, %c0_i32_0 : i32, i32
  }
  func.func @transform_2(%arg0: i32) -> (i32, i32) {
    %c0_i32 = arith.constant 0 : i32
    %c0_i32_0 = arith.constant 0 : i32
    %c0_i32_1 = arith.constant 0 : i32
    return %c0_i32, %c0_i32_0 : i32, i32
  }
}

</mosaic_0001>

<llo_original>
// kernel: tpu_custom_call.1
$region0: #{tpu_custom_call.1}
  #allocation0 [shape = 'u32[]', space=smem, size = 0x4, offset = 0x4, fixed_abs, tag = 'smem constant byte address 0x4 - core index']
  #allocation1 [shape = 'u32[144,128]{1,0:T(1,128)}', space=vmem, size = 0x12000, scoped, tag = 'internal scratch']
  #allocation2 [shape = 'f32[8,32]{1,0:T(8,128)}', space=vmem, size = 0x1000, scoped, tag = 'scratch operand']
  #allocation3 [shape = 'f32[1,8]{1,0:T(1,128)}', space=vmem, size = 0x200, scoped, tag = 'scratch operand']
  #allocation4 [shape = 'f32[1,1]{1,0:T(1,128)}', space=vmem, size = 0x200, scoped, tag = 'scratch operand']
  %s0 = inlined_call_operand.hbm [shape: f32[8,32], index: 0, kind: input, shape index: {}]
  %s1 = inlined_call_operand.hbm [shape: f32[8,32], index: 1, kind: input, shape index: {}]
  %s2 = inlined_call_operand.hbm [shape: f32[1,1], index: 2, kind: output, shape index: {}]
  %s3 = sld [smem:[#allocation0]]
  $region34: #{tpu_custom_call.1} parent=0
    _
  %s5 = ssub.s32 1, %s3
  %s6 = scalar_select 0, %s5, %s3
  $region1: #{tpu_custom_call.1} parent=0
    #allocation5 [shape = 'u8[4096]{0}', space=vmem, size = 0x1000, scoped, tag = 'input window, operand 0, single buffered']
    #allocation6 [shape = 's32[1]{0}', space=sflag, size = 0x4, scoped, tag = 'scoped memory for tpu_custom_call.1']
    #allocation7 [shape = 's32[1]{0}', space=sflag, size = 0x4, scoped, tag = 'scoped memory for tpu_custom_call.1']
    #allocation8 [shape = 'u8[4096]{0}', space=vmem, size = 0x1000, scoped, tag = 'input window, operand 1, single buffered']
    #allocation9 [shape = 's32[1]{0}', space=sflag, size = 0x4, scoped, tag = 'scoped memory for tpu_custom_call.1']
    #allocation10 [shape = 'u8[512]{0}', space=vmem, size = 0x400, scoped, tag = 'output window, operand 0, single buffered']
    %7 = vsyncpa [#allocation6], 0
    %8 = vsyncpa [#allocation9], 0
    %9 = vsyncpa [#allocation7], 0
    // Predicated region
    $region2: #{tpu_custom_call.1} parent=1 // pred_check
      _
    $region3: #{tpu_custom_call.1} parent=1 // pred_check_branch
      %11 = sbr.rel (0) target = $region5
    $region4: #{tpu_custom_call.1} parent=1 // pred_region
      %s13 = ssub.s32 128, 128
      %14 = vsyncadd [#allocation6], %s13
      %s16 = sshll.u32 [#allocation5], 4
      %s17 = int_to_ptr.vmem [resolvable:$true] %s16
      %19 = dma.hbm_to_vmem [thread:$0]  %s0, 128, %s17, [#allocation6]
    $region5: #{tpu_custom_call.1} parent=1 // pred_fallthru
      _
    // Predicated region
    $region6: #{tpu_custom_call.1} parent=1 // pred_check
      _
    $region7: #{tpu_custom_call.1} parent=1 // pred_check_branch
      %21 = sbr.rel (0) target = $region9
    $region8: #{tpu_custom_call.1} parent=1 // pred_region
      %s23 = ssub.s32 128, 128
      %24 = vsyncadd [#allocation9], %s23
      %s26 = sshll.u32 [#allocation8], 4
      %s27 = int_to_ptr.vmem [resolvable:$true] %s26
      %29 = dma.hbm_to_vmem [thread:$0]  %s1, 128, %s27, [#allocation9]
    $region9: #{tpu_custom_call.1} parent=1 // pred_fallthru
      _
    // Predicated region
    $region10: #{tpu_custom_call.1} parent=1 // pred_check
      _
    $region11: #{tpu_custom_call.1} parent=1 // pred_check_branch
      %31 = sbr.rel (0) target = $region13
    $region12: #{tpu_custom_call.1} parent=1 // pred_region
      %32 = dma.done [#allocation6], 128
    $region13: #{tpu_custom_call.1} parent=1 // pred_fallthru
      _
    // Predicated region
    $region14: #{tpu_custom_call.1} parent=1 // pred_check
      _
    $region15: #{tpu_custom_call.1} parent=1 // pred_check_branch
      %34 = sbr.rel (0) target = $region17
    $region16: #{tpu_custom_call.1} parent=1 // pred_region
      %35 = dma.done [#allocation9], 128
    $region17: #{tpu_custom_call.1} parent=1 // pred_fallthru
      _
    %p36 = scmp.eq.s32.totalorder 0, 0
    // Predicated region
    $region18: #{tpu_custom_call.1} parent=1 // pred_check
      %p37 = pneg %p36
    $region19: #{tpu_custom_call.1} parent=1 // pred_check_branch
      %39 = sbr.rel (%p37) target = $region21
    $region20: #{tpu_custom_call.1} parent=1 // pred_region
      %vm40 = vcmask 57344
      %41 = vst.msk [vmem:[#allocation3] sm:$0x1] %vm40, 0.0
      %vm42 = vcmask 0
      %43 = vst.msk [vmem:[#allocation4] sm:$0x1] %vm42, 0.0
      %v44 = vld [vmem:[#allocation8] sm:$0xff]
      %v45 = vmul.f32 %v44, %v44
      %vm46 = vcmask 261120
      %v47 = vsel %vm46, %v45, 0.0
      %48 = vadd.xlane.f32.xlu0 %v47
      %v49 = vpop.xlane.xlu0 %48
      %v50 = vmax.f32 %v49, 1e-24
      %v51 = vrsqrt.pop %v50
      %v52 = vmul.f32 %v44, %v51
      %53 = vst.msk [vmem:[#allocation2] sm:$0xff] %vm46, %v52
    $region21: #{tpu_custom_call.1} parent=1 // pred_fallthru
      _
    %v54 = vld [vmem:[#allocation5] sm:$0xff]
    %v55 = vmul.f32 %v54, %v54
    %vm56 = vcmask 261120
    %v57 = vsel %vm56, %v55, 0.0
    %58 = vadd.xlane.f32.xlu0 %v57
    %v59 = vpop.xlane.xlu0 %58
    %v60 = vmax.f32 %v59, 1e-24
    %v61 = vrsqrt.pop %v60
    %v62 = vmul.f32 %v54, %v61
    %v63 = vmul.f32 %v62, 5.0
    %v64 = vld [vmem:[#allocation2] sm:$0xff]
    %s65 = smul.u32 0, 8
    %s66 = scalar_lea.vmem [#allocation2], %s65
    %v67 = vld [vmem:[%s66] sm:$0xff]
    %v68 = vmul.f32 %v63, %v67
    %v69 = vsel %vm56, %v68, 0.0
    %70 = vadd.xlane.f32.xlu0 %v69
    %v71 = vpop.xlane.xlu0 %70
    %v73 = vsel %vm56, %v63, 0
    %v76 = vsel %vm56, %v64, 0
    %78 = vmatprep.subr.mxu0 0.0
    %79 = vmatpush1.xpose.msra.mxu0 %v76
    %80 = vmatprep.subr.mxu0 0.0
    %81 = vmatpush1.xpose.msra.mxu0 0.0
    %82 = vmatprep.subr.mxu0 0.0
    %83 = vmatpush1.xpose.msra.mxu0 0.0
    %84 = vmatprep.subr.mxu0 0.0
    %85 = vmatpush1.xpose.msra.mxu0 0.0
    %86 = vmatprep.subr.mxu0 0.0
    %87 = vmatpush1.xpose.msra.mxu0 0.0
    %88 = vmatprep.subr.mxu0 0.0
    %89 = vmatpush1.xpose.msra.mxu0 0.0
    %90 = vmatprep.subr.mxu0 0.0
    %91 = vmatpush1.xpose.msra.mxu0 0.0
    %92 = vmatprep.subr.mxu0 0.0
    %93 = vmatpush1.xpose.msra.mxu0 0.0
    %94 = vmatprep.subr.mxu0 0.0
    %95 = vmatpush1.xpose.msra.mxu0 0.0
    %96 = vmatprep.subr.mxu0 0.0
    %97 = vmatpush1.xpose.msra.mxu0 0.0
    %98 = vmatprep.subr.mxu0 0.0
    %99 = vmatpush1.xpose.msra.mxu0 0.0
    %100 = vmatprep.subr.mxu0 0.0
    %101 = vmatpush1.xpose.msra.mxu0 0.0
    %102 = vmatprep.subr.mxu0 0.0
    %103 = vmatpush1.xpose.msra.mxu0 0.0
    %104 = vmatprep.subr.mxu0 0.0
    %105 = vmatpush1.xpose.msra.mxu0 0.0
    %106 = vmatprep.subr.mxu0 0.0
    %107 = vmatpush1.xpose.msra.mxu0 0.0
    %108 = vmatprep.subr.mxu0 0.0
    %109 = vmatpush1.xpose.msra.mxu0 0.0
    %110 = vmatprep.subr.mxu0 0.0
    %111 = vmatpush1.xpose.msra.mxu0 0.0
    %112 = vmatprep.subr.mxu0 0.0
    %113 = vmatpush1.xpose.msra.mxu0 0.0
    %114 = vmatprep.subr.mxu0 0.0
    %115 = vmatpush1.xpose.msra.mxu0 0.0
    %116 = vmatprep.subr.mxu0 0.0
    %117 = vmatpush1.xpose.msra.mxu0 0.0
    %118 = vmatprep.subr.mxu0 0.0
    %119 = vmatpush1.xpose.msra.mxu0 0.0
    %120 = vmatprep.subr.mxu0 0.0
    %121 = vmatpush1.xpose.msra.mxu0 0.0
    %122 = vmatprep.subr.mxu0 0.0
    %123 = vmatpush1.xpose.msra.mxu0 0.0
    %124 = vmatprep.subr.mxu0 0.0
    %125 = vmatpush1.xpose.msra.mxu0 0.0
    %126 = vmatprep.subr.mxu0 0.0
    %127 = vmatpush1.xpose.msra.mxu0 0.0
    %128 = vmatprep.subr.mxu0 0.0
    %129 = vmatpush1.xpose.msra.mxu0 0.0
    %130 = vmatprep.subr.mxu0 0.0
    %131 = vmatpush1.xpose.msra.mxu0 0.0
    %132 = vmatprep.subr.mxu0 0.0
    %133 = vmatpush1.xpose.msra.mxu0 0.0
    %134 = vmatprep.subr.mxu0 0.0
    %135 = vmatpush1.xpose.msra.mxu0 0.0
    %136 = vmatprep.subr.mxu0 0.0
    %137 = vmatpush1.xpose.msra.mxu0 0.0
    %138 = vmatprep.subr.mxu0 0.0
    %139 = vmatpush1.xpose.msra.mxu0 0.0
    %140 = vmatprep.subr.mxu0 0.0
    %141 = vmatpush1.xpose.msra.mxu0 0.0
    %142 = vmatprep.mubr.f32.mxu0 0.0
    %143 = vmatmul.mubr.f32.gmra.mrb[0].mxu0 %v73
    %v144 = vpop.f32.mrb[0].mxu0
    %v145 = vadd.f32 0.0, %v144
    %v146 = vpop.f32.mrb[0].mxu0
    %147 = vdwg.mxu0
    %v148 = vmul.f32 %v145, 1.442695
    %v149 = vpow.pop %v148
    %vm150 = vcmask 64512
    %v151 = vsel %vm150, %v149, 0.0
    %152 = vadd.xlane.f32.xlu0 %v151
    %v153 = vpop.xlane.xlu0 %152
    %v154 = vld [vmem:[#allocation3] sm:$0x1]
    %v155 = vrot.slane %v151, 4
    %v156 = vadd.f32 %v151, %v155
    %v157 = vrot.slane %v156, 2
    %v158 = vadd.f32 %v156, %v157
    %v159 = vrot.slane %v158, 1
    %v160 = vadd.f32 %v158, %v159
    %v161 = vadd.f32 %v154, %v160
    %vm162 = vcmask 57344
    %163 = vst.msk [vmem:[#allocation3] sm:$0x1] %vm162, %v161
    %v164 = vld [vmem:[#allocation4] sm:$0x1]
    %v165 = vmul.f32 %v71, 2.0
    %v166 = vlog2.pop %v153
    %v167 = vmul.f32 %v166, 0.6931472
    %v168 = vsub.f32 %v165, %v167
    %vm169 = vcmask 7168
    %v170 = vsel %vm169, %v168, 0.0
    %171 = vadd.xlane.f32.xlu0 %v170
    %v172 = vpop.xlane.xlu0 %171
    %v173 = vrot.slane %v172, 4
    %v174 = vadd.f32 %v172, %v173
    %v175 = vrot.slane %v174, 2
    %v176 = vadd.f32 %v174, %v175
    %v177 = vrot.slane %v176, 1
    %v178 = vadd.f32 %v176, %v177
    %s179 = vtos %v178
    %v180 = vstv %s179
    %v181 = vadd.f32 %v164, %v180
    %vm182 = vcmask 0
    %183 = vst.msk [vmem:[#allocation4] sm:$0x1] %vm182, %v181
    // Predicated region
    $region22: #{tpu_custom_call.1} parent=1 // pred_check
      %p184 = pneg %p36
    $region23: #{tpu_custom_call.1} parent=1 // pred_check_branch
      %186 = sbr.rel (%p184) target = $region25
    $region24: #{tpu_custom_call.1} parent=1 // pred_region
      %v187 = vld [vmem:[#allocation3] sm:$0x1]
      %v188 = vld [vmem:[#allocation4] sm:$0x1]
      %v189 = vlog2.pop %v187
      %v190 = vmul.f32 %v189, 0.6931472
      %v191 = vsel %vm162, %v190, 0.0
      %192 = vadd.xlane.f32.xlu0 %v191
      %v193 = vpop.xlane.xlu0 %192
      %v194 = vrot.slane %v193, 4
      %v195 = vadd.f32 %v193, %v194
      %v196 = vrot.slane %v195, 2
      %v197 = vadd.f32 %v195, %v196
      %v198 = vrot.slane %v197, 1
      %v199 = vadd.f32 %v197, %v198
      %s200 = vtos %v199
      %v201 = vstv %s200
      %v202 = vsub.f32 %v188, %v201
      %v203 = vmul.f32 %v202, -0.0625
      %204 = vst.msk [vmem:[#allocation10] sm:$0x1] %vm182, %v203
    $region25: #{tpu_custom_call.1} parent=1 // pred_fallthru
      _
    // Predicated region
    $region26: #{tpu_custom_call.1} parent=1 // pred_check
      _
    $region27: #{tpu_custom_call.1} parent=1 // pred_check_branch
      %206 = sbr.rel (0) target = $region29
    $region28: #{tpu_custom_call.1} parent=1 // pred_region
      %s208 = ssub.s32 16, 16
      %209 = vsyncadd [#allocation7], %s208
      %s211 = sshll.u32 [#allocation10], 4
      %s212 = int_to_ptr.vmem [resolvable:$true] %s211
      %214 = dma.vmem_to_hbm [thread:$0]  %s212, 16, %s2, [#allocation7]
    $region29: #{tpu_custom_call.1} parent=1 // pred_fallthru
      _
    // Predicated region
    $region30: #{tpu_custom_call.1} parent=1 // pred_check
      _
    $region31: #{tpu_custom_call.1} parent=1 // pred_check_branch
      %216 = sbr.rel (0) target = $region33
    $region32: #{tpu_custom_call.1} parent=1 // pred_region
      %217 = dma.done [#allocation7], 16
    $region33: #{tpu_custom_call.1} parent=1 // pred_fallthru
      _
    %218 = vsyncpa [#allocation6], 1
    %219 = vsyncpa [#allocation9], 1
    %220 = vsyncpa [#allocation7], 1

</llo_original>
